<compile_context>
chip_gen: v6e
topology: v6e:2x2x1
jax: 0.10.0
libtpu: 0.0.40
codegen_flags: <defaults>
</compile_context>

<pallas_src>
import jax
import jax.numpy as jnp
from jax.experimental import pallas as pl
from jax.experimental.pallas import tpu as pltpu


PACK = 8  # rows folded per packed row: Dp = 8*32 = 256 lanes, Cp = 8*48 = 384 lanes


def _round_up(x, m):
    return ((x + m - 1) // m) * m


def _ipamask_kernel(feat_ref, mask_ref, out_ref):
    # feat_ref: (tm, Dp) f32 feature row tile.  Cast to the mask's compute dtype
    #           *inside* the kernel (hides under DMA slack; avoids the wrapper
    #           astype anti-pattern that adds an extra HBM pass).
    # mask_ref: (Dp, Cp) block-diagonal phone mask (bf16), same block every step.
    # out_ref : (tm, Cp) output tile (bf16 by default), f32 MXU accumulation.
    out_ref[...] = jnp.dot(
        feat_ref[...].astype(mask_ref.dtype),
        mask_ref[...],
        preferred_element_type=jnp.float32,
    ).astype(out_ref.dtype)


class IPAMaskPallas:
    """Pallas equivalent of s3prl IPAMask: predicted = features @ phone_mask."""

    def __init__(self, phone_mask, *, compute_dtype=jnp.bfloat16,
                 out_dtype=jnp.bfloat16, tm=2048):
        D, C = phone_mask.shape
        self.D, self.C = D, C
        self.tm = tm
        self.compute_dtype = compute_dtype
        self.out_dtype = out_dtype
        # Built ONCE (the mask is a fixed module constant): block-diagonal kron so
        # PACK consecutive feature rows are contracted independently in a single
        # lane-dense (256 -> 384) matmul.  0/1 entries are exact in bf16.
        self.phone_mask_c = phone_mask.astype(compute_dtype)
        self.mask_bd = jnp.kron(
            jnp.eye(PACK, dtype=phone_mask.dtype), phone_mask
        ).astype(compute_dtype)

    def _bulk_matmul(self, feat_packed):
        rows, Dp = feat_packed.shape
        Cp = PACK * self.C

        # Tile selection: one full-extent tile for small problems; otherwise at
        # least 2 roughly balanced tiles so both v7x TensorCores get work (one
        # extra ~0.35us grid step is noise on single-core v5e/v6e), capped at tm.
        if rows <= 512:
            tm_eff = rows
        else:
            tm_eff = min(self.tm, _round_up(pl.cdiv(rows, 2), 16))
        grid_m = pl.cdiv(rows, tm_eff)

        return pl.pallas_call(
            _ipamask_kernel,
            out_shape=jax.ShapeDtypeStruct((rows, Cp), self.out_dtype),
            grid_spec=pltpu.PrefetchScalarGridSpec(
                num_scalar_prefetch=0,
                grid=(grid_m,),
                in_specs=[
                    # f32 feature rows (ragged tail block clipped by Pallas).
                    pl.BlockSpec((tm_eff, Dp), lambda i: (i, 0)),
                    # Whole mask every step; constant block index keeps it
                    # resident.  (Single-buffering it would only save ~192 KiB
                    # of VMEM; headroom is ample, so default buffering is kept.)
                    pl.BlockSpec((Dp, Cp), lambda i: (0, 0)),
                ],
                out_specs=pl.BlockSpec((tm_eff, Cp), lambda i: (i, 0)),
            ),
            compiler_params=pltpu.CompilerParams(
                dimension_semantics=("parallel",),   # shard row tiles across TCs
                vmem_limit_bytes=32 * 1024 * 1024,   # covers f32-out / larger tm on v5e
            ),
        )(feat_packed, self.mask_bd)

    def __call__(self, features):
        B, T, D = features.shape
        assert D == self.D, "feature dim must match phone_mask rows"
        M = B * T
        C = self.C

        feat2d = features.reshape(M, D)          # contiguous reshape, no data movement
        m_bulk = (M // PACK) * PACK
        rem = M - m_bulk

        outs = []
        if m_bulk > 0:
            bulk = feat2d if rem == 0 else feat2d[:m_bulk]
            feat_packed = bulk.reshape(m_bulk // PACK, PACK * D)   # f32, no wrapper cast
            out_bulk = self._bulk_matmul(feat_packed)              # (rows, PACK*C)
            outs.append(out_bulk.reshape(m_bulk, C))
        if rem > 0:
            # <=7 leftover rows: tiny epilogue with the same numerics as the kernel
            # (bf16 operands, f32 accumulation) instead of degrading the whole
            # tensor to a lane-sparse pack=1/2/4 layout.
            tail = feat2d[m_bulk:].astype(self.compute_dtype)
            out_tail = jnp.dot(tail, self.phone_mask_c,
                               preferred_element_type=jnp.float32)
            outs.append(out_tail.astype(self.out_dtype))

        out2d = outs[0] if len(outs) == 1 else jnp.concatenate(outs, axis=0)
        return out2d.reshape(B, T, C)


if __name__ == "__main__":
    # Small shapes consistent with the module's forward:
    #   features: (batch, seq, input_dim), phone_mask: (input_dim, num_classes)
    B, T, D, C = 2, 8, 32, 48

    key = jax.random.PRNGKey(0)
    k_feat, k_mask, k_feat2 = jax.random.split(key, 3)

    features = jax.random.normal(k_feat, (B, T, D), dtype=jnp.float32)
    # Deterministic stand-in for the ARPABET->IPA 0/1 matrix (transposed in __init__).
    # TODO(synk): the original module reads ARPABET_IPA_MATRIX.csv via pandas; that
    # file I/O has no in-kernel equivalent and is replaced by this in-script mask.
    phone_mask = (jax.random.uniform(k_mask, (D, C)) > 0.5).astype(jnp.float32)

    ref_f32 = jnp.einsum("btd,dc->btc", features, phone_mask)

    # 1) Default config: bf16 compute + bf16 output (roofline-optimal).
    model = IPAMaskPallas(phone_mask)
    out = jax.block_until_ready(model(features))
    assert out.shape == (B, T, C) and out.dtype == jnp.bfloat16
    assert jnp.allclose(out.astype(jnp.float32), ref_f32, atol=2e-1, rtol=5e-2), \
        "bf16-out kernel mismatch vs f32 reference"

    # 2) f32-output config (opt-in fidelity) vs a bit-matched bf16-operand reference.
    model_f32 = IPAMaskPallas(phone_mask, out_dtype=jnp.float32)
    out_f32 = jax.block_until_ready(model_f32(features))
    ref_bf16 = jnp.einsum(
        "btd,dc->btc",
        features.astype(jnp.bfloat16), phone_mask.astype(jnp.bfloat16),
        preferred_element_type=jnp.float32)
    assert out_f32.dtype == jnp.float32
    assert jnp.allclose(out_f32, ref_bf16, atol=1e-3, rtol=1e-3), \
        "f32-out kernel mismatch vs bf16 reference"

    # 3) Row count not divisible by 8: Pallas pack=8 bulk + tiny einsum epilogue.
    B2, T2 = 1, 13
    features2 = jax.random.normal(k_feat2, (B2, T2, D), dtype=jnp.float32)
    out2 = jax.block_until_ready(model(features2))
    ref2 = jnp.einsum("btd,dc->btc", features2, phone_mask)
    assert out2.shape == (B2, T2, C)
    assert jnp.allclose(out2.astype(jnp.float32), ref2, atol=2e-1, rtol=5e-2), \
        "ragged-M path mismatch vs f32 reference"

    print("KERNEL_OK")
</pallas_src>

<mosaic_0001>
module attributes {stable_mosaic.version = 11 : i64} {
  func.func @_ipamask_kernel(%arg0: i32, %arg1: memref<2x256xf32, #tpu.memory_space<vmem>>, %arg2: memref<256x384xbf16, #tpu.memory_space<vmem>>, %arg3: memref<2x384xbf16, #tpu.memory_space<vmem>>) attributes {dimension_semantics = [#tpu.dimension_semantics<parallel>], iteration_bounds = array<i64: 1>, scalar_prefetch = 0 : i64, scratch_operands = 0 : i64, tpu.core_type = #tpu.core_type<tc>, window_params = [{transform_indices = @transform_0, window_bounds = array<i64: 2, 256>}, {pipeline_mode = #tpu.pipeline_mode<synchronous>, transform_indices = @transform_1, window_bounds = array<i64: 256, 384>}, {transform_indices = @transform_2, window_bounds = array<i64: 2, 384>}]} {
    %c0 = arith.constant 0 : index
    %c0_0 = arith.constant 0 : index
    %0 = vector.load %arg1[%c0, %c0_0] : memref<2x256xf32, #tpu.memory_space<vmem>>, vector<2x256xf32>
    %1 = arith.truncf %0 : vector<2x256xf32> to vector<2x256xbf16>
    %c0_1 = arith.constant 0 : index
    %c0_2 = arith.constant 0 : index
    %2 = vector.load %arg2[%c0_1, %c0_2] : memref<256x384xbf16, #tpu.memory_space<vmem>>, vector<256x384xbf16>
    %cst = arith.constant dense<0.000000e+00> : vector<2x384xf32>
    %3 = tpu.matmul %1, %2, %cst {dimension_numbers = #tpu.dot_dimension_numbers<[1], [0], [0], [1], [0, 0, 1, 1], [], []>} : vector<2x256xbf16>, vector<256x384xbf16>, vector<2x384xf32> -> vector<2x384xf32>
    %4 = arith.truncf %3 : vector<2x384xf32> to vector<2x384xbf16>
    %c0_3 = arith.constant 0 : index
    %c0_4 = arith.constant 0 : index
    %5 = vector.load %arg3[%c0_3, %c0_4] : memref<2x384xbf16, #tpu.memory_space<vmem>>, vector<2x384xbf16>
    tpu.vector_store %arg3[%c0_3, %c0_4], %4 {strides = array<i32>} : memref<2x384xbf16, #tpu.memory_space<vmem>>, vector<2x384xbf16>,
    return
  }
  func.func @transform_0(%arg0: i32) -> (i32, i32) {
    %c0_i32 = arith.constant 0 : i32
    %c0_i32_0 = arith.constant 0 : i32
    return %arg0, %c0_i32 : i32, i32
  }
  func.func @transform_1(%arg0: i32) -> (i32, i32) {
    %c0_i32 = arith.constant 0 : i32
    %c0_i32_0 = arith.constant 0 : i32
    %c0_i32_1 = arith.constant 0 : i32
    return %c0_i32, %c0_i32_0 : i32, i32
  }
  func.func @transform_2(%arg0: i32) -> (i32, i32) {
    %c0_i32 = arith.constant 0 : i32
    %c0_i32_0 = arith.constant 0 : i32
    return %arg0, %c0_i32 : i32, i32
  }
}

</mosaic_0001>

<llo_original>
// kernel: tpu_custom_call.1
$region0: #{tpu_custom_call.1}
  #allocation0 [shape = 'u32[]', space=smem, size = 0x4, offset = 0x4, fixed_abs, tag = 'smem constant byte address 0x4 - core index']
  #allocation1 [shape = 'u32[144,128]{1,0:T(1,128)}', space=vmem, size = 0x12000, scoped, tag = 'internal scratch']
  %s0 = inlined_call_operand.hbm [shape: f32[2,256], index: 0, kind: input, shape index: {}]
  %s1 = inlined_call_operand.hbm [shape: bf16[256,384], index: 1, kind: input, shape index: {}]
  %s2 = inlined_call_operand.hbm [shape: bf16[2,384], index: 2, kind: output, shape index: {}]
  %s3 = sld [smem:[#allocation0]]
  $region26: #{tpu_custom_call.1} parent=0
    _
  %s5 = ssub.s32 1, %s3
  %s6 = scalar_select 0, %s5, %s3
  $region1: #{tpu_custom_call.1} parent=0
    #allocation2 [shape = 'u8[2048]{0}', space=vmem, size = 0x800, scoped, tag = 'input window, operand 0, single buffered']
    #allocation3 [shape = 's32[1]{0}', space=sflag, size = 0x4, scoped, tag = 'scoped memory for tpu_custom_call.1']
    #allocation4 [shape = 's32[1]{0}', space=sflag, size = 0x4, scoped, tag = 'scoped memory for tpu_custom_call.1']
    #allocation5 [shape = 'u8[196608]{0}', space=vmem, size = 0x30000, scoped, tag = 'input window, operand 1, single buffered']
    #allocation6 [shape = 's32[1]{0}', space=sflag, size = 0x4, scoped, tag = 'scoped memory for tpu_custom_call.1']
    #allocation7 [shape = 'u8[1536]{0}', space=vmem, size = 0x800, scoped, tag = 'output window, operand 0, single buffered']
    %7 = vsyncpa [#allocation3], 0
    %8 = vsyncpa [#allocation6], 0
    %9 = vsyncpa [#allocation4], 0
    // Predicated region
    $region2: #{tpu_custom_call.1} parent=1 // pred_check
      _
    $region3: #{tpu_custom_call.1} parent=1 // pred_check_branch
      %11 = sbr.rel (0) target = $region5
    $region4: #{tpu_custom_call.1} parent=1 // pred_region
      %s13 = ssub.s32 64, 64
      %14 = vsyncadd [#allocation3], %s13
      %s16 = sshll.u32 [#allocation2], 4
      %s17 = int_to_ptr.vmem [resolvable:$true] %s16
      %19 = dma.hbm_to_vmem [thread:$0]  %s0, 64, %s17, [#allocation3]
    $region5: #{tpu_custom_call.1} parent=1 // pred_fallthru
      _
    // Predicated region
    $region6: #{tpu_custom_call.1} parent=1 // pred_check
      _
    $region7: #{tpu_custom_call.1} parent=1 // pred_check_branch
      %21 = sbr.rel (0) target = $region9
    $region8: #{tpu_custom_call.1} parent=1 // pred_region
      %s23 = ssub.s32 6144, 6144
      %24 = vsyncadd [#allocation6], %s23
      %s25 = sshll.u32 [#allocation5], 4
      %s26 = int_to_ptr.vmem [resolvable:$true] %s25
      %31 = dma.hbm_to_vmem [thread:$0]  %s1, 6144, %s26, [#allocation6], 192, 192, 12
    $region9: #{tpu_custom_call.1} parent=1 // pred_fallthru
      _
    // Predicated region
    $region10: #{tpu_custom_call.1} parent=1 // pred_check
      _
    $region11: #{tpu_custom_call.1} parent=1 // pred_check_branch
      %33 = sbr.rel (0) target = $region13
    $region12: #{tpu_custom_call.1} parent=1 // pred_region
      %34 = dma.done [#allocation3], 64
    $region13: #{tpu_custom_call.1} parent=1 // pred_fallthru
      _
    // Predicated region
    $region14: #{tpu_custom_call.1} parent=1 // pred_check
      _
    $region15: #{tpu_custom_call.1} parent=1 // pred_check_branch
      %36 = sbr.rel (0) target = $region17
    $region16: #{tpu_custom_call.1} parent=1 // pred_region
      %37 = dma.done [#allocation6], 6144
    $region17: #{tpu_custom_call.1} parent=1 // pred_fallthru
      _
    %v39 = vld [vmem:[#allocation2] sm:$0xf]
    %v42 = vunpack.c.l.s4 1983009808
    %v43 = vunpack.c.0.s8 %v42
    %v44 = vlaneseq
    %v45 = vshrl.u32 %v44, 7
    %v46 = vsub.s32 %v43, %v45
    %v47 = vrot.slane %v39, %v46
    %v48 = vcombine.high %v47, %v47
    %v51 = vpack.c.bf16 %v47, %v47
    %v52 = vpack.c.bf16 %v48, %v48
    %v53 = vld [vmem:[#allocation5] sm:$0xff]
    %v54 = vld [vmem:[#allocation5 + $0x8] sm:$0xf]
    %v55 = vld [vmem:[#allocation5 + $0xc] sm:$0xff]
    %v56 = vld [vmem:[#allocation5 + $0x14] sm:$0xf]
    %v57 = vld [vmem:[#allocation5 + $0x18] sm:$0xff]
    %v58 = vld [vmem:[#allocation5 + $0x20] sm:$0xf]
    %v59 = vld [vmem:[#allocation5 + $0x24] sm:$0xff]
    %v60 = vld [vmem:[#allocation5 + $0x2c] sm:$0xf]
    %v61 = vld [vmem:[#allocation5 + $0x30] sm:$0xff]
    %v62 = vld [vmem:[#allocation5 + $0x38] sm:$0xf]
    %v63 = vld [vmem:[#allocation5 + $0x3c] sm:$0xff]
    %v64 = vld [vmem:[#allocation5 + $0x44] sm:$0xf]
    %v65 = vld [vmem:[#allocation5 + $0x48] sm:$0xff]
    %v66 = vld [vmem:[#allocation5 + $0x50] sm:$0xf]
    %v67 = vld [vmem:[#allocation5 + $0x54] sm:$0xff]
    %v68 = vld [vmem:[#allocation5 + $0x5c] sm:$0xf]
    %v69 = vld [vmem:[#allocation5 + $0x60] sm:$0xff]
    %v70 = vld [vmem:[#allocation5 + $0x68] sm:$0xf]
    %v71 = vld [vmem:[#allocation5 + $0x6c] sm:$0xff]
    %v72 = vld [vmem:[#allocation5 + $0x74] sm:$0xf]
    %v73 = vld [vmem:[#allocation5 + $0x78] sm:$0xff]
    %v74 = vld [vmem:[#allocation5 + $0x80] sm:$0xf]
    %v75 = vld [vmem:[#allocation5 + $0x84] sm:$0xff]
    %v76 = vld [vmem:[#allocation5 + $0x8c] sm:$0xf]
    %v77 = vld [vmem:[#allocation5 + $0x90] sm:$0xff]
    %v78 = vld [vmem:[#allocation5 + $0x98] sm:$0xf]
    %v79 = vld [vmem:[#allocation5 + $0x9c] sm:$0xff]
    %v80 = vld [vmem:[#allocation5 + $0xa4] sm:$0xf]
    %v81 = vld [vmem:[#allocation5 + $0xa8] sm:$0xff]
    %v82 = vld [vmem:[#allocation5 + $0xb0] sm:$0xf]
    %v83 = vld [vmem:[#allocation5 + $0xb4] sm:$0xff]
    %v84 = vld [vmem:[#allocation5 + $0xbc] sm:$0xf]
    %v85 = vld [vmem:[#allocation5 + $0xc0] sm:$0xff]
    %v86 = vld [vmem:[#allocation5 + $0xc8] sm:$0xf]
    %v87 = vld [vmem:[#allocation5 + $0xcc] sm:$0xff]
    %v88 = vld [vmem:[#allocation5 + $0xd4] sm:$0xf]
    %v89 = vld [vmem:[#allocation5 + $0xd8] sm:$0xff]
    %v90 = vld [vmem:[#allocation5 + $0xe0] sm:$0xf]
    %v91 = vld [vmem:[#allocation5 + $0xe4] sm:$0xff]
    %v92 = vld [vmem:[#allocation5 + $0xec] sm:$0xf]
    %v93 = vld [vmem:[#allocation5 + $0xf0] sm:$0xff]
    %v94 = vld [vmem:[#allocation5 + $0xf8] sm:$0xf]
    %v95 = vld [vmem:[#allocation5 + $0xfc] sm:$0xff]
    %v96 = vld [vmem:[#allocation5 + $0x104] sm:$0xf]
    %v97 = vld [vmem:[#allocation5 + $0x108] sm:$0xff]
    %v98 = vld [vmem:[#allocation5 + $0x110] sm:$0xf]
    %v99 = vld [vmem:[#allocation5 + $0x114] sm:$0xff]
    %v100 = vld [vmem:[#allocation5 + $0x11c] sm:$0xf]
    %v101 = vld [vmem:[#allocation5 + $0x120] sm:$0xff]
    %v102 = vld [vmem:[#allocation5 + $0x128] sm:$0xf]
    %v103 = vld [vmem:[#allocation5 + $0x12c] sm:$0xff]
    %v104 = vld [vmem:[#allocation5 + $0x134] sm:$0xf]
    %v105 = vld [vmem:[#allocation5 + $0x138] sm:$0xff]
    %v106 = vld [vmem:[#allocation5 + $0x140] sm:$0xf]
    %v107 = vld [vmem:[#allocation5 + $0x144] sm:$0xff]
    %v108 = vld [vmem:[#allocation5 + $0x14c] sm:$0xf]
    %v109 = vld [vmem:[#allocation5 + $0x150] sm:$0xff]
    %v110 = vld [vmem:[#allocation5 + $0x158] sm:$0xf]
    %v111 = vld [vmem:[#allocation5 + $0x15c] sm:$0xff]
    %v112 = vld [vmem:[#allocation5 + $0x164] sm:$0xf]
    %v113 = vld [vmem:[#allocation5 + $0x168] sm:$0xff]
    %v114 = vld [vmem:[#allocation5 + $0x170] sm:$0xf]
    %v115 = vld [vmem:[#allocation5 + $0x174] sm:$0xff]
    %v116 = vld [vmem:[#allocation5 + $0x17c] sm:$0xf]
    %v181 = vunpack.c.l.b16 %v53
    %v182 = vunpack.c.h.b16 %v53
    %v183 = vunpack.c.l.b16 %v54
    %v184 = vunpack.c.l.b16 %v55
    %v185 = vunpack.c.h.b16 %v55
    %v186 = vunpack.c.l.b16 %v56
    %v187 = vunpack.c.l.b16 %v57
    %v188 = vunpack.c.h.b16 %v57
    %v189 = vunpack.c.l.b16 %v58
    %v190 = vunpack.c.l.b16 %v59
    %v191 = vunpack.c.h.b16 %v59
    %v192 = vunpack.c.l.b16 %v60
    %v193 = vunpack.c.l.b16 %v61
    %v194 = vunpack.c.h.b16 %v61
    %v195 = vunpack.c.l.b16 %v62
    %v196 = vunpack.c.l.b16 %v63
    %v197 = vunpack.c.h.b16 %v63
    %v198 = vunpack.c.l.b16 %v64
    %v199 = vunpack.c.l.b16 %v65
    %v200 = vunpack.c.h.b16 %v65
    %v201 = vunpack.c.l.b16 %v66
    %v202 = vunpack.c.l.b16 %v67
    %v203 = vunpack.c.h.b16 %v67
    %v204 = vunpack.c.l.b16 %v68
    %v205 = vunpack.c.l.b16 %v69
    %v206 = vunpack.c.h.b16 %v69
    %v207 = vunpack.c.l.b16 %v70
    %v208 = vunpack.c.l.b16 %v71
    %v209 = vunpack.c.h.b16 %v71
    %v210 = vunpack.c.l.b16 %v72
    %v211 = vunpack.c.l.b16 %v73
    %v212 = vunpack.c.h.b16 %v73
    %v213 = vunpack.c.l.b16 %v74
    %v214 = vunpack.c.l.b16 %v75
    %v215 = vunpack.c.h.b16 %v75
    %v216 = vunpack.c.l.b16 %v76
    %v217 = vunpack.c.l.b16 %v77
    %v218 = vunpack.c.h.b16 %v77
    %v219 = vunpack.c.l.b16 %v78
    %v220 = vunpack.c.l.b16 %v79
    %v221 = vunpack.c.h.b16 %v79
    %v222 = vunpack.c.l.b16 %v80
    %v223 = vunpack.c.l.b16 %v81
    %v224 = vunpack.c.h.b16 %v81
    %v225 = vunpack.c.l.b16 %v82
    %v226 = vunpack.c.l.b16 %v83
    %v227 = vunpack.c.h.b16 %v83
    %v228 = vunpack.c.l.b16 %v84
    %v229 = vunpack.c.l.b16 %v85
    %v230 = vunpack.c.h.b16 %v85
    %v231 = vunpack.c.l.b16 %v86
    %v232 = vunpack.c.l.b16 %v87
    %v233 = vunpack.c.h.b16 %v87
    %v234 = vunpack.c.l.b16 %v88
    %v235 = vunpack.c.l.b16 %v89
    %v236 = vunpack.c.h.b16 %v89
    %v237 = vunpack.c.l.b16 %v90
    %v238 = vunpack.c.l.b16 %v91
    %v239 = vunpack.c.h.b16 %v91
    %v240 = vunpack.c.l.b16 %v92
    %v241 = vunpack.c.l.b16 %v93
    %v242 = vunpack.c.h.b16 %v93
    %v243 = vunpack.c.l.b16 %v94
    %v244 = vunpack.c.l.b16 %v95
    %v245 = vunpack.c.h.b16 %v95
    %v246 = vunpack.c.l.b16 %v96
    %v247 = vunpack.c.l.b16 %v97
    %v248 = vunpack.c.h.b16 %v97
    %v249 = vunpack.c.l.b16 %v98
    %v250 = vunpack.c.l.b16 %v99
    %v251 = vunpack.c.h.b16 %v99
    %v252 = vunpack.c.l.b16 %v100
    %v253 = vunpack.c.l.b16 %v101
    %v254 = vunpack.c.h.b16 %v101
    %v255 = vunpack.c.l.b16 %v102
    %v256 = vunpack.c.l.b16 %v103
    %v257 = vunpack.c.h.b16 %v103
    %v258 = vunpack.c.l.b16 %v104
    %v259 = vunpack.c.l.b16 %v105
    %v260 = vunpack.c.h.b16 %v105
    %v261 = vunpack.c.l.b16 %v106
    %v262 = vunpack.c.l.b16 %v107
    %v263 = vunpack.c.h.b16 %v107
    %v264 = vunpack.c.l.b16 %v108
    %v265 = vunpack.c.l.b16 %v109
    %v266 = vunpack.c.h.b16 %v109
    %v267 = vunpack.c.l.b16 %v110
    %v268 = vunpack.c.l.b16 %v111
    %v269 = vunpack.c.h.b16 %v111
    %v270 = vunpack.c.l.b16 %v112
    %v271 = vunpack.c.l.b16 %v113
    %v272 = vunpack.c.h.b16 %v113
    %v273 = vunpack.c.l.b16 %v114
    %v274 = vunpack.c.l.b16 %v115
    %v275 = vunpack.c.h.b16 %v115
    %v276 = vunpack.c.l.b16 %v116
    %v277 = vpack.c.b16 %v184, %v181
    %v278 = vpack.c.b16 %v185, %v182
    %v279 = vpack.c.b16 %v186, %v183
    %v280 = vpack.c.b16 %v190, %v187
    %v281 = vpack.c.b16 %v191, %v188
    %v282 = vpack.c.b16 %v192, %v189
    %v283 = vpack.c.b16 %v196, %v193
    %v284 = vpack.c.b16 %v197, %v194
    %v285 = vpack.c.b16 %v198, %v195
    %v286 = vpack.c.b16 %v202, %v199
    %v287 = vpack.c.b16 %v203, %v200
    %v288 = vpack.c.b16 %v204, %v201
    %v289 = vpack.c.b16 %v208, %v205
    %v290 = vpack.c.b16 %v209, %v206
    %v291 = vpack.c.b16 %v210, %v207
    %v292 = vpack.c.b16 %v214, %v211
    %v293 = vpack.c.b16 %v215, %v212
    %v294 = vpack.c.b16 %v216, %v213
    %v295 = vpack.c.b16 %v220, %v217
    %v296 = vpack.c.b16 %v221, %v218
    %v297 = vpack.c.b16 %v222, %v219
    %v298 = vpack.c.b16 %v226, %v223
    %v299 = vpack.c.b16 %v227, %v224
    %v300 = vpack.c.b16 %v228, %v225
    %v301 = vpack.c.b16 %v232, %v229
    %v302 = vpack.c.b16 %v233, %v230
    %v303 = vpack.c.b16 %v234, %v231
    %v304 = vpack.c.b16 %v238, %v235
    %v305 = vpack.c.b16 %v239, %v236
    %v306 = vpack.c.b16 %v240, %v237
    %v307 = vpack.c.b16 %v244, %v241
    %v308 = vpack.c.b16 %v245, %v242
    %v309 = vpack.c.b16 %v246, %v243
    %v310 = vpack.c.b16 %v250, %v247
    %v311 = vpack.c.b16 %v251, %v248
    %v312 = vpack.c.b16 %v252, %v249
    %v313 = vpack.c.b16 %v256, %v253
    %v314 = vpack.c.b16 %v257, %v254
    %v315 = vpack.c.b16 %v258, %v255
    %v316 = vpack.c.b16 %v262, %v259
    %v317 = vpack.c.b16 %v263, %v260
    %v318 = vpack.c.b16 %v264, %v261
    %v319 = vpack.c.b16 %v268, %v265
    %v320 = vpack.c.b16 %v269, %v266
    %v321 = vpack.c.b16 %v270, %v267
    %v322 = vpack.c.b16 %v274, %v271
    %v323 = vpack.c.b16 %v275, %v272
    %v324 = vpack.c.b16 %v276, %v273
    %373 = vmatprep.subr.bf16.mxu0 %v299
    %374 = vmatpush1.bf16.msra.mxu0 %v298
    %375 = vmatprep.subr.bf16.mxu0 %v296
    %376 = vmatpush1.bf16.msra.mxu0 %v295
    %377 = vmatprep.subr.bf16.mxu0 %v293
    %378 = vmatpush1.bf16.msra.mxu0 %v292
    %379 = vmatprep.subr.bf16.mxu0 %v290
    %380 = vmatpush1.bf16.msra.mxu0 %v289
    %381 = vmatprep.subr.bf16.mxu0 %v287
    %382 = vmatpush1.bf16.msra.mxu0 %v286
    %383 = vmatprep.subr.bf16.mxu0 %v284
    %384 = vmatpush1.bf16.msra.mxu0 %v283
    %385 = vmatprep.subr.bf16.mxu0 %v281
    %386 = vmatpush1.bf16.msra.mxu0 %v280
    %387 = vmatprep.subr.bf16.mxu0 %v278
    %388 = vmatpush1.bf16.msra.mxu0 %v277
    %389 = vmatprep.subr.bf16.mxu0 %v323
    %390 = vmatpush2.bf16.msra.mxu0 %v322
    %391 = vmatprep.subr.bf16.mxu0 %v320
    %392 = vmatpush2.bf16.msra.mxu0 %v319
    %393 = vmatprep.subr.bf16.mxu0 %v317
    %394 = vmatpush2.bf16.msra.mxu0 %v316
    %395 = vmatprep.subr.bf16.mxu0 %v314
    %396 = vmatpush2.bf16.msra.mxu0 %v313
    %397 = vmatprep.subr.bf16.mxu0 %v311
    %398 = vmatpush2.bf16.msra.mxu0 %v310
    %399 = vmatprep.subr.bf16.mxu0 %v308
    %400 = vmatpush2.bf16.msra.mxu0 %v307
    %401 = vmatprep.subr.bf16.mxu0 %v305
    %402 = vmatpush2.bf16.msra.mxu0 %v304
    %403 = vmatprep.subr.bf16.mxu0 %v302
    %404 = vmatpush2.bf16.msra.mxu0 %v301
    %405 = vmatprep.mubr.bf16.mxu0 %v52
    %406 = vmatmul.mubr.bf16.gmra.mxu0 %v51
    %v407 = vpop.f32.mrf.mxu0
    %v408 = vadd.f32 0.0, %v407
    %v409 = vpop.f32.mrf.mxu0
    %v410 = vadd.f32 0.0, %v409
    %v411 = vpop.f32.mrf.mxu0
    %v412 = vpop.f32.mrf.mxu0
    %413 = vdwg.mxu0
    %414 = vmatprep.subr.bf16.mxu0 0
    %415 = vmatpush1.bf16.msra.mxu0 %v300
    %416 = vmatprep.subr.bf16.mxu0 0
    %417 = vmatpush1.bf16.msra.mxu0 %v297
    %418 = vmatprep.subr.bf16.mxu0 0
    %419 = vmatpush1.bf16.msra.mxu0 %v294
    %420 = vmatprep.subr.bf16.mxu0 0
    %421 = vmatpush1.bf16.msra.mxu0 %v291
    %422 = vmatprep.subr.bf16.mxu0 0
    %423 = vmatpush1.bf16.msra.mxu0 %v288
    %424 = vmatprep.subr.bf16.mxu0 0
    %425 = vmatpush1.bf16.msra.mxu0 %v285
    %426 = vmatprep.subr.bf16.mxu0 0
    %427 = vmatpush1.bf16.msra.mxu0 %v282
    %428 = vmatprep.subr.bf16.mxu0 0
    %429 = vmatpush1.bf16.msra.mxu0 %v279
    %430 = vmatprep.subr.bf16.mxu0 0
    %431 = vmatpush2.bf16.msra.mxu0 %v324
    %432 = vmatprep.subr.bf16.mxu0 0
    %433 = vmatpush2.bf16.msra.mxu0 %v321
    %434 = vmatprep.subr.bf16.mxu0 0
    %435 = vmatpush2.bf16.msra.mxu0 %v318
    %436 = vmatprep.subr.bf16.mxu0 0
    %437 = vmatpush2.bf16.msra.mxu0 %v315
    %438 = vmatprep.subr.bf16.mxu0 0
    %439 = vmatpush2.bf16.msra.mxu0 %v312
    %440 = vmatprep.subr.bf16.mxu0 0
    %441 = vmatpush2.bf16.msra.mxu0 %v309
    %442 = vmatprep.subr.bf16.mxu0 0
    %443 = vmatpush2.bf16.msra.mxu0 %v306
    %444 = vmatprep.subr.bf16.mxu0 0
    %445 = vmatpush2.bf16.msra.mxu0 %v303
    %446 = vmatprep.mubr.bf16.mxu0 %v52
    %447 = vmatmul.mubr.bf16.gmra.mxu0 %v51
    %v448 = vpop.f32.mrf.mxu0
    %v449 = vadd.f32 0.0, %v448
    %v450 = vpop.f32.mrf.mxu0
    %v451 = vpop.f32.mrf.mxu0
    %v452 = vpop.f32.mrf.mxu0
    %453 = vdwg.mxu0
    %v454 = vpack.c.bf16 %v408, %v408
    %v455 = vpack.c.bf16 %v410, %v410
    %v456 = vpack.c.bf16 %v449, %v449
    %v460 = vcombine.low %v454, %v455
    %v462 = vunpack.c.l.s4 1966171168
    %v463 = vunpack.c.0.s8 %v462
    %v464 = vlaneseq
    %v465 = vshrl.u32 %v464, 7
    %v466 = vsub.s32 %v463, %v465
    %v467 = vrot.slane %v460, %v466
    %v469 = vunpack.c.l.s4 1966171168
    %v470 = vunpack.c.0.s8 %v469
    %v471 = vlaneseq
    %v472 = vshrl.u32 %v471, 7
    %v473 = vsub.s32 %v470, %v472
    %v474 = vrot.slane %v456, %v473
    %v475 = vcombine.low %v467, %v474
    %v477 = vunpack.c.l.s4 1966171168
    %v478 = vunpack.c.0.s8 %v477
    %v479 = vlaneseq
    %v480 = vshrl.u32 %v479, 7
    %v481 = vsub.s32 %v478, %v480
    %v482 = vrot.slane %v475, %v481
    %484 = vst [vmem:[#allocation7] sm:$0x7] %v482
    // Predicated region
    $region18: #{tpu_custom_call.1} parent=1 // pred_check
      _
    $region19: #{tpu_custom_call.1} parent=1 // pred_check_branch
      %486 = sbr.rel (0) target = $region21
    $region20: #{tpu_custom_call.1} parent=1 // pred_region
      %s488 = ssub.s32 48, 48
      %489 = vsyncadd [#allocation4], %s488
      %s491 = sshll.u32 [#allocation7], 4
      %s492 = int_to_ptr.vmem [resolvable:$true] %s491
      %494 = dma.vmem_to_hbm [thread:$0]  %s492, 48, %s2, [#allocation4]
    $region21: #{tpu_custom_call.1} parent=1 // pred_fallthru
      _
    // Predicated region
    $region22: #{tpu_custom_call.1} parent=1 // pred_check
      _
    $region23: #{tpu_custom_call.1} parent=1 // pred_check_branch
      %496 = sbr.rel (0) target = $region25
    $region24: #{tpu_custom_call.1} parent=1 // pred_region
      %497 = dma.done [#allocation4], 48
    $region25: #{tpu_custom_call.1} parent=1 // pred_fallthru
      _
    %498 = vsyncpa [#allocation3], 1
    %499 = vsyncpa [#allocation6], 1
    %500 = vsyncpa [#allocation4], 1

</llo_original>
